<compile_context>
chip_gen: v7x
topology: tpu7x:2x2x1
jax: 0.10.0
libtpu: 0.0.40
codegen_flags: <defaults>
</compile_context>

<pallas_src>
import functools
import math

import jax
import jax.numpy as jnp
from jax.experimental import pallas as pl
from jax.experimental.pallas import tpu as pltpu

ALPHA = 0.25
GAMMA = 2.0
LANES = 128
ACC_ROWS = 8                        # (8, 128) f32 accumulator == one vreg
MAX_ROW_TILE = 4096                 # 4096 x 128 f32 = 2 MiB per input block
SPLIT_MIN_ROWS = 2 * MAX_ROW_TILE   # 2-way core split only when >= 2 full tiles
_EXP_NEG100 = math.exp(-100.0)      # exp of the BCELoss log clamp


def _round_up(x, m):
    return (x + m - 1) // m * m


def _focal_loss_kernel(p_ref, t_ref, acc_ref, *, alpha, gamma, rows, row_tile,
                       tiles_per_split, binary_targets):
    c = pl.program_id(0)   # core-split index ("parallel")
    i = pl.program_id(1)   # tile index within the split ("arbitrary")

    @pl.when(i == 0)
    def _():
        acc_ref[...] = jnp.zeros_like(acc_ref)

    # Un-clamped global row offset of this block.  The index_map clamps the
    # block index so the DMA window always starts in-bounds; rows past `rows`
    # (ragged last tile, or a fully-phantom tile when the tile count is odd
    # under the split) carry stale data and are masked here, BEFORE the logs,
    # to the loss-neutral pair (p=1, t=1)  ->  bce = 0, contribution = 0.
    block_start = (c * tiles_per_split + i) * row_tile
    row_ids = jax.lax.broadcasted_iota(jnp.int32, (row_tile, LANES), 0)
    valid = row_ids < (rows - block_start)

    one = jnp.float32(1.0)
    p = jnp.where(valid, p_ref[...].astype(jnp.float32), one)
    t = jnp.where(valid, t_ref[...].astype(jnp.float32), one)

    if binary_targets:
        # Fast path (exact only for t in {0, 1}): 1 transcendental/element
        # instead of 3 — the single EUP slot is the binding unit on v7x.
        sel = jnp.where(t >= 0.5, p, one - p)
        bce = -jnp.maximum(jnp.log(sel), jnp.float32(-100.0))
        pt = jnp.maximum(sel, jnp.float32(_EXP_NEG100))      # == exp(-bce)
    else:
        # torch.nn.BCELoss(reduction='none') with its log clamp at -100.
        log_p = jnp.maximum(jnp.log(p), -100.0)
        log_1mp = jnp.maximum(jnp.log(one - p), -100.0)
        bce = -(t * log_p + (one - t) * log_1mp)
        pt = jnp.exp(-bce)

    omt = one - pt
    if gamma == 2:
        # Default path: plain square — no float-exponent pow (2 extra EUP ops)
        # and no NaN if pt rounds slightly above 1.
        w = omt * omt
    else:
        # NOTE: clamping the base diverges from torch (which NaNs) for 1-pt<0.
        w = jnp.power(jnp.maximum(omt, 0.0), jnp.float32(gamma))

    contrib = jnp.float32(alpha) * (w * bce)

    # Fold the (row_tile, 128) tile into the small resident accumulator via
    # sublane-group sums: layout-compatible, pure VPU adds (VALU has slack).
    acc_ref[...] += jnp.sum(
        contrib.reshape(row_tile // ACC_ROWS, ACC_ROWS, LANES), axis=0)


def focal_loss(inputs, targets, alpha=ALPHA, gamma=GAMMA, *,
               binary_targets=False, max_row_tile=MAX_ROW_TILE,
               split_min_rows=SPLIT_MIN_ROWS):
    """Focal loss over arbitrary-shape probability / target tensors.

    Pass inputs in their natural (possibly narrow) dtype — bf16 probabilities,
    int8/bool targets — the cast to f32 happens in-kernel, so narrower dtypes
    cut HBM traffic proportionally on the HBM-bound generations (v5e/v6e).
    Set `binary_targets=True` only when every target is exactly 0 or 1.
    """
    assert inputs.shape == targets.shape
    n_elems = inputs.size

    flat_p = inputs.reshape(-1)
    flat_t = targets.reshape(-1)

    # Lane-dense (rows, 128) slab, 8-row aligned.  A real pad (loss-neutral
    # p=1, t=1, at most 1023 elements) is only materialised when n_elems is
    # not a multiple of 8*128; all row-tile raggedness is handled in-kernel.
    rows = _round_up(pl.cdiv(n_elems, LANES), ACC_ROWS)
    pad = rows * LANES - n_elems
    if pad:
        flat_p = jnp.pad(flat_p, (0, pad), constant_values=1)
        flat_t = jnp.pad(flat_t, (0, pad), constant_values=1)

    p2d = flat_p.reshape(rows, LANES)   # original dtype; cast happens in-kernel
    t2d = flat_t.reshape(rows, LANES)

    max_row_tile = _round_up(max_row_tile, ACC_ROWS)
    row_tile = rows if rows <= max_row_tile else max_row_tile

    num_splits = 2 if rows >= split_min_rows else 1
    num_tiles = pl.cdiv(rows, row_tile)
    num_splits = min(num_splits, num_tiles)
    tiles_per_split = pl.cdiv(num_tiles, num_splits)
    last_block = num_tiles - 1

    def in_index_map(c, i):
        # Clamp so the DMA window always starts in-bounds; the kernel masks
        # ragged / phantom rows using the UN-clamped block index.
        return (jnp.minimum(c * tiles_per_split + i, last_block), 0)

    kernel = functools.partial(
        _focal_loss_kernel, alpha=float(alpha), gamma=float(gamma), rows=rows,
        row_tile=row_tile, tiles_per_split=tiles_per_split,
        binary_targets=binary_targets)

    acc = pl.pallas_call(
        kernel,
        out_shape=jax.ShapeDtypeStruct((num_splits * ACC_ROWS, LANES),
                                       jnp.float32),
        grid_spec=pltpu.PrefetchScalarGridSpec(
            num_scalar_prefetch=0,
            grid=(num_splits, tiles_per_split),
            in_specs=[
                pl.BlockSpec((row_tile, LANES), in_index_map),
                pl.BlockSpec((row_tile, LANES), in_index_map),
            ],
            out_specs=pl.BlockSpec((ACC_ROWS, LANES), lambda c, i: (c, 0)),
        ),
        compiler_params=pltpu.CompilerParams(
            dimension_semantics=("parallel", "arbitrary"),
        ),
    )(p2d, t2d)

    # Final reduce touches only num_splits * 4 KiB — launch overhead only.
    return jnp.sum(acc) / jnp.float32(n_elems)


def focal_loss_ref(inputs, targets, alpha=ALPHA, gamma=GAMMA):
    p = inputs.astype(jnp.float32)
    t = targets.astype(jnp.float32)
    log_p = jnp.maximum(jnp.log(p), -100.0)
    log_1mp = jnp.maximum(jnp.log(1.0 - p), -100.0)
    bce = -(t * log_p + (1.0 - t) * log_1mp)
    pt = jnp.exp(-bce)
    return jnp.mean(alpha * (1.0 - pt) ** gamma * bce)


if __name__ == "__main__":
    key = jax.random.PRNGKey(0)
    keys = jax.random.split(key, 8)

    def make(shape, kp, kt):
        p = jax.random.uniform(kp, shape, dtype=jnp.float32,
                               minval=1e-4, maxval=1.0 - 1e-4)
        t = (jax.random.uniform(kt, shape) > 0.5).astype(jnp.float32)
        return p, t

    def check(p, t, **kw):
        got = jax.block_until_ready(focal_loss(p, t, **kw))
        want = focal_loss_ref(p, t)
        assert jnp.allclose(got, want, rtol=1e-5, atol=1e-6), (kw, got, want)

    # 1) Small NCHW probabilities / binary targets: single tile, single split.
    #    Also exercises the binary-target fast path.
    p, t = make((2, 4, 16, 16), keys[0], keys[1])
    check(p, t)
    check(p, t, binary_targets=True)

    # 2) Non-1024-divisible element count -> loss-neutral lane-tail pad path.
    p, t = make((3, 5, 7, 11), keys[2], keys[3])
    check(p, t)

    # 3) Multi-tile + 2-way core split (small tile sizes forced so shapes stay
    #    small): rows=2048, row_tile=512 -> grid (2, 2), no ragged blocks.
    p, t = make((2, 8, 128, 128), keys[4], keys[5])
    check(p, t, max_row_tile=512, split_min_rows=1024)
    check(p, t, max_row_tile=512, split_min_rows=1024, binary_targets=True)

    # 4) Ragged last tile + odd tile count under the split: the phantom block
    #    on core 1 is clamped by the index_map and fully masked in-kernel.
    p, t = make((2, 6, 100, 100), keys[6], keys[7])
    check(p, t, max_row_tile=320, split_min_rows=512)

    print("KERNEL_OK")
</pallas_src>

<mosaic_0001>
module attributes {stable_mosaic.version = 11 : i64} {
  func.func @_focal_loss_kernel(%arg0: i32, %arg1: i32, %arg2: memref<16x128xf32, #tpu.memory_space<vmem>>, %arg3: memref<16x128xf32, #tpu.memory_space<vmem>>, %arg4: memref<8x128xf32, #tpu.memory_space<vmem>>) attributes {dimension_semantics = [#tpu.dimension_semantics<parallel>, #tpu.dimension_semantics<arbitrary>], iteration_bounds = array<i64: 1, 1>, scalar_prefetch = 0 : i64, scratch_operands = 0 : i64, tpu.core_type = #tpu.core_type<tc>, window_params = [{transform_indices = @transform_0, window_bounds = array<i64: 16, 128>}, {transform_indices = @transform_1, window_bounds = array<i64: 16, 128>}, {transform_indices = @transform_2, window_bounds = array<i64: 8, 128>}]} {
    %c0_i32 = arith.constant 0 : i32
    %0 = arith.cmpi eq, %arg1, %c0_i32 : i32
    %1 = arith.extui %0 : i1 to i32
    %c0_i32_0 = arith.constant 0 : i32
    %2 = arith.cmpi ne, %1, %c0_i32_0 : i32
    scf.if %2 {
      %cst_19 = arith.constant 0.000000e+00 : f32
      %45 = vector.broadcast %cst_19 : f32 to vector<8x128xf32>
      %c0_20 = arith.constant 0 : index
      %c0_21 = arith.constant 0 : index
      %46 = vector.load %arg4[%c0_20, %c0_21] : memref<8x128xf32, #tpu.memory_space<vmem>>, vector<8x128xf32>
      tpu.vector_store %arg4[%c0_20, %c0_21], %45 {strides = array<i32>} : memref<8x128xf32, #tpu.memory_space<vmem>>, vector<8x128xf32>,
    } else {
    }
    %c1_i32 = arith.constant 1 : i32
    %3 = arith.muli %arg0, %c1_i32 : i32
    %4 = arith.addi %3, %arg1 : i32
    %c16_i32 = arith.constant 16 : i32
    %5 = arith.muli %4, %c16_i32 : i32
    %6 = tpu.iota {dimensions = array<i32: 0>} : vector<16x128xi32>
    %c16_i32_1 = arith.constant 16 : i32
    %7 = arith.subi %c16_i32_1, %5 : i32
    %8 = vector.broadcast %7 : i32 to vector<16x128xi32>
    %9 = arith.cmpi slt, %6, %8 : vector<16x128xi32>
    %c0 = arith.constant 0 : index
    %c0_2 = arith.constant 0 : index
    %10 = vector.load %arg2[%c0, %c0_2] : memref<16x128xf32, #tpu.memory_space<vmem>>, vector<16x128xf32>
    %cst = arith.constant 1.000000e+00 : f32
    %11 = vector.broadcast %cst : f32 to vector<16x128xf32>
    %12 = arith.select %9, %10, %11 : vector<16x128xi1>, vector<16x128xf32>
    %c0_3 = arith.constant 0 : index
    %c0_4 = arith.constant 0 : index
    %13 = vector.load %arg3[%c0_3, %c0_4] : memref<16x128xf32, #tpu.memory_space<vmem>>, vector<16x128xf32>
    %cst_5 = arith.constant 1.000000e+00 : f32
    %14 = vector.broadcast %cst_5 : f32 to vector<16x128xf32>
    %15 = arith.select %9, %13, %14 : vector<16x128xi1>, vector<16x128xf32>
    %16 = math.log %12 : vector<16x128xf32>
    %cst_6 = arith.constant -1.000000e+02 : f32
    %17 = vector.broadcast %cst_6 : f32 to vector<16x128xf32>
    %18 = arith.maximumf %16, %17 : vector<16x128xf32>
    %cst_7 = arith.constant 1.000000e+00 : f32
    %19 = vector.broadcast %cst_7 : f32 to vector<16x128xf32>
    %20 = arith.subf %19, %12 : vector<16x128xf32>
    %21 = math.log %20 : vector<16x128xf32>
    %cst_8 = arith.constant -1.000000e+02 : f32
    %22 = vector.broadcast %cst_8 : f32 to vector<16x128xf32>
    %23 = arith.maximumf %21, %22 : vector<16x128xf32>
    %24 = arith.mulf %15, %18 : vector<16x128xf32>
    %cst_9 = arith.constant 1.000000e+00 : f32
    %25 = vector.broadcast %cst_9 : f32 to vector<16x128xf32>
    %26 = arith.subf %25, %15 : vector<16x128xf32>
    %27 = arith.mulf %26, %23 : vector<16x128xf32>
    %28 = arith.addf %24, %27 : vector<16x128xf32>
    %cst_10 = arith.constant 0.000000e+00 : f32
    %29 = vector.broadcast %cst_10 : f32 to vector<16x128xf32>
    %30 = arith.subf %29, %28 : vector<16x128xf32>
    %cst_11 = arith.constant 0.000000e+00 : f32
    %31 = vector.broadcast %cst_11 : f32 to vector<16x128xf32>
    %32 = arith.subf %31, %30 : vector<16x128xf32>
    %33 = math.exp %32 : vector<16x128xf32>
    %cst_12 = arith.constant 1.000000e+00 : f32
    %34 = vector.broadcast %cst_12 : f32 to vector<16x128xf32>
    %35 = arith.subf %34, %33 : vector<16x128xf32>
    %36 = arith.mulf %35, %35 : vector<16x128xf32>
    %37 = arith.mulf %36, %30 : vector<16x128xf32>
    %cst_13 = arith.constant 2.500000e-01 : f32
    %38 = vector.broadcast %cst_13 : f32 to vector<16x128xf32>
    %39 = arith.mulf %38, %37 : vector<16x128xf32>
    %c0_14 = arith.constant 0 : index
    %c0_15 = arith.constant 0 : index
    %40 = vector.load %arg4[%c0_14, %c0_15] : memref<8x128xf32, #tpu.memory_space<vmem>>, vector<8x128xf32>
    %41 = vector.shape_cast %39 : vector<16x128xf32> to vector<2x8x128xf32>
    %cst_16 = arith.constant dense<0.000000e+00> : vector<8x128xf32>
    %42 = vector.multi_reduction <add>, %41, %cst_16 [0] : vector<2x8x128xf32> to vector<8x128xf32>
    %43 = arith.addf %40, %42 : vector<8x128xf32>
    %c0_17 = arith.constant 0 : index
    %c0_18 = arith.constant 0 : index
    %44 = vector.load %arg4[%c0_17, %c0_18] : memref<8x128xf32, #tpu.memory_space<vmem>>, vector<8x128xf32>
    tpu.vector_store %arg4[%c0_17, %c0_18], %43 {strides = array<i32>} : memref<8x128xf32, #tpu.memory_space<vmem>>, vector<8x128xf32>,
    return
  }
  func.func @transform_0(%arg0: i32, %arg1: i32) -> (i32, i32) {
    %c1_i32 = arith.constant 1 : i32
    %0 = arith.muli %arg0, %c1_i32 : i32
    %1 = arith.addi %0, %arg1 : i32
    %c0_i32 = arith.constant 0 : i32
    %2 = arith.minsi %1, %c0_i32 : i32
    %c0_i32_0 = arith.constant 0 : i32
    %c0_i32_1 = arith.constant 0 : i32
    return %2, %c0_i32_0 : i32, i32
  }
  func.func @transform_1(%arg0: i32, %arg1: i32) -> (i32, i32) {
    %c1_i32 = arith.constant 1 : i32
    %0 = arith.muli %arg0, %c1_i32 : i32
    %1 = arith.addi %0, %arg1 : i32
    %c0_i32 = arith.constant 0 : i32
    %2 = arith.minsi %1, %c0_i32 : i32
    %c0_i32_0 = arith.constant 0 : i32
    %c0_i32_1 = arith.constant 0 : i32
    return %2, %c0_i32_0 : i32, i32
  }
  func.func @transform_2(%arg0: i32, %arg1: i32) -> (i32, i32) {
    %c0_i32 = arith.constant 0 : i32
    %c0_i32_0 = arith.constant 0 : i32
    return %arg0, %c0_i32 : i32, i32
  }
}

</mosaic_0001>

<llo_original>
// kernel: tpu_custom_call.1
$region0: #{tpu_custom_call.1}
  #allocation0 [shape = 'u32[]', space=smem, size = 0x4, offset = 0x4, fixed_abs, tag = 'smem constant byte address 0x4 - core index']
  #allocation1 [shape = 'u32[144,128]{1,0:T(1,128)}', space=vmem, size = 0x12000, scoped, tag = 'internal scratch']
  %s0 = inlined_call_operand.hbm [shape: f32[16,128], index: 0, kind: input, shape index: {}]
  %s1 = inlined_call_operand.hbm [shape: f32[16,128], index: 1, kind: input, shape index: {}]
  %s2 = inlined_call_operand.hbm [shape: f32[8,128], index: 2, kind: output, shape index: {}]
  %s3 = sld [smem:[#allocation0]]
  $region30: #{tpu_custom_call.1} parent=0
    _
  %s5 = ssub.s32 1, %s3
  %s6 = scalar_select 0, %s5, %s3
  $region1: #{tpu_custom_call.1} parent=0
    #allocation2 [shape = 'u8[8192]{0}', space=vmem, size = 0x2000, scoped, tag = 'input window, operand 0, single buffered']
    #allocation3 [shape = 's32[1]{0}', space=sflag, size = 0x4, scoped, tag = 'scoped memory for tpu_custom_call.1']
    #allocation4 [shape = 's32[1]{0}', space=sflag, size = 0x4, scoped, tag = 'scoped memory for tpu_custom_call.1']
    #allocation5 [shape = 'u8[8192]{0}', space=vmem, size = 0x2000, scoped, tag = 'input window, operand 1, single buffered']
    #allocation6 [shape = 's32[1]{0}', space=sflag, size = 0x4, scoped, tag = 'scoped memory for tpu_custom_call.1']
    #allocation7 [shape = 'u8[4096]{0}', space=vmem, size = 0x1000, scoped, tag = 'output window, operand 0, single buffered']
    %7 = vsyncpa [#allocation3], 0
    %8 = vsyncpa [#allocation6], 0
    %9 = vsyncpa [#allocation4], 0
    // Predicated region
    $region2: #{tpu_custom_call.1} parent=1 // pred_check
      _
    $region3: #{tpu_custom_call.1} parent=1 // pred_check_branch
      %11 = sbr.rel (0) target = $region5
    $region4: #{tpu_custom_call.1} parent=1 // pred_region
      %s12 = sadd.s32 0, 0
      %p13 = scmp.lt.s32.totalorder %s12, 0
      %s14 = scalar_select %p13, %s12, 0
      %s15 = smul.u32 2, %s14
      %s17 = ssub.s32 256, 256
      %18 = vsyncadd [#allocation3], %s17
      %s19 = smul.addr %s15, 128
      %s20 = scalar_lea.hbm %s0, %s19
      %s21 = sshll.u32 [#allocation2], 4
      %s22 = int_to_ptr.vmem [resolvable:$true] %s21
      %27 = dma.hbm_to_vmem [thread:$0]  %s20, 256, %s22, [#allocation3], 128, 128, 8
    $region5: #{tpu_custom_call.1} parent=1 // pred_fallthru
      _
    // Predicated region
    $region6: #{tpu_custom_call.1} parent=1 // pred_check
      _
    $region7: #{tpu_custom_call.1} parent=1 // pred_check_branch
      %29 = sbr.rel (0) target = $region9
    $region8: #{tpu_custom_call.1} parent=1 // pred_region
      %s30 = sadd.s32 0, 0
      %p31 = scmp.lt.s32.totalorder %s30, 0
      %s32 = scalar_select %p31, %s30, 0
      %s33 = smul.u32 2, %s32
      %s35 = ssub.s32 256, 256
      %36 = vsyncadd [#allocation6], %s35
      %s37 = smul.addr %s33, 128
      %s38 = scalar_lea.hbm %s1, %s37
      %s39 = sshll.u32 [#allocation5], 4
      %s40 = int_to_ptr.vmem [resolvable:$true] %s39
      %45 = dma.hbm_to_vmem [thread:$0]  %s38, 256, %s40, [#allocation6], 128, 128, 8
    $region9: #{tpu_custom_call.1} parent=1 // pred_fallthru
      _
    // Predicated region
    $region10: #{tpu_custom_call.1} parent=1 // pred_check
      _
    $region11: #{tpu_custom_call.1} parent=1 // pred_check_branch
      %47 = sbr.rel (0) target = $region13
    $region12: #{tpu_custom_call.1} parent=1 // pred_region
      %48 = dma.done [#allocation3], 256
    $region13: #{tpu_custom_call.1} parent=1 // pred_fallthru
      _
    // Predicated region
    $region14: #{tpu_custom_call.1} parent=1 // pred_check
      _
    $region15: #{tpu_custom_call.1} parent=1 // pred_check_branch
      %50 = sbr.rel (0) target = $region17
    $region16: #{tpu_custom_call.1} parent=1 // pred_region
      %51 = dma.done [#allocation6], 256
    $region17: #{tpu_custom_call.1} parent=1 // pred_fallthru
      _
    %s52 = sadd.s32 0, 0
    %p53 = scmp.lt.s32.totalorder %s52, 0
    %s54 = scalar_select %p53, %s52, 0
    %s55 = smul.u32 2, %s54
    %s56 = sadd.s32 0, 0
    %p57 = scmp.lt.s32.totalorder %s56, 0
    %s58 = scalar_select %p57, %s56, 0
    %s59 = smul.u32 2, %s58
    %p60 = scmp.eq.s32.totalorder 0, 0
    // Predicated region
    $region18: #{tpu_custom_call.1} parent=1 // pred_check
      %p61 = pneg %p60
    $region19: #{tpu_custom_call.1} parent=1 // pred_check_branch
      %63 = sbr.rel (%p61) target = $region21
    $region20: #{tpu_custom_call.1} parent=1 // pred_region
      %64 = vst [vmem:[#allocation7] sm:$0xff] 0.0
    $region21: #{tpu_custom_call.1} parent=1 // pred_fallthru
      _
    %s65 = sadd.s32 0, 0
    %s66 = smul.u32 %s65, 16
    %v67 = vlaneseq
    %v68 = vshrl.u32 %v67, 7
    %v69 = vadd.s32 %v68, 8
    %s70 = ssub.s32 16, %s66
    %v71 = vstv %s70
    %vm72 = vcmp.lt.s32.totalorder %v68, %v71
    %vm73 = vcmp.lt.s32.totalorder %v69, %v71
    %v74 = vld [vmem:[#allocation2] sm:$0xff]
    %v75 = vld [vmem:[#allocation2 + $0x8] sm:$0xff]
    %v76 = vsel %vm72, %v74, 1.0
    %v77 = vsel %vm73, %v75, 1.0
    %v78 = vld [vmem:[#allocation5] sm:$0xff]
    %v79 = vld [vmem:[#allocation5 + $0x8] sm:$0xff]
    %v80 = vsel %vm72, %v78, 1.0
    %v81 = vsel %vm73, %v79, 1.0
    %v82 = vlog2.pop %v76
    %v83 = vmul.f32 %v82, 0.6931472
    %v84 = vlog2.pop %v77
    %v85 = vmul.f32 %v84, 0.6931472
    %v86 = vmax.f32 %v83, -100.0
    %v87 = vmax.f32 %v85, -100.0
    %v88 = vsub.f32 1.0, %v76
    %v89 = vsub.f32 1.0, %v77
    %v90 = vlog2.pop %v88
    %v91 = vmul.f32 %v90, 0.6931472
    %v92 = vlog2.pop %v89
    %v93 = vmul.f32 %v92, 0.6931472
    %v94 = vmax.f32 %v91, -100.0
    %v95 = vmax.f32 %v93, -100.0
    %v96 = vmul.f32 %v80, %v86
    %v97 = vmul.f32 %v81, %v87
    %v98 = vsub.f32 1.0, %v80
    %v99 = vsub.f32 1.0, %v81
    %v100 = vmul.f32 %v98, %v94
    %v101 = vmul.f32 %v99, %v95
    %v102 = vadd.f32 %v96, %v100
    %v103 = vadd.f32 %v97, %v101
    %v104 = vsub.f32 0.0, %v102
    %v105 = vsub.f32 0.0, %v103
    %v106 = vsub.f32 0.0, %v104
    %v107 = vsub.f32 0.0, %v105
    %v108 = vmul.f32 %v106, 1.442695
    %v109 = vpow.pop %v108
    %v110 = vmul.f32 %v107, 1.442695
    %v111 = vpow.pop %v110
    %v112 = vsub.f32 1.0, %v109
    %v113 = vsub.f32 1.0, %v111
    %v114 = vmul.f32 %v112, %v112
    %v115 = vmul.f32 %v113, %v113
    %v116 = vmul.f32 %v114, %v104
    %v117 = vmul.f32 %v115, %v105
    %v118 = vmul.f32 %v116, 0.25
    %v119 = vmul.f32 %v117, 0.25
    %v120 = vld [vmem:[#allocation7] sm:$0xff]
    %v121 = vadd.f32 %v118, %v119
    %v122 = vadd.f32 %v120, %v121
    %123 = vst [vmem:[#allocation7] sm:$0xff] %v122
    // Predicated region
    $region22: #{tpu_custom_call.1} parent=1 // pred_check
      _
    $region23: #{tpu_custom_call.1} parent=1 // pred_check_branch
      %125 = sbr.rel (0) target = $region25
    $region24: #{tpu_custom_call.1} parent=1 // pred_region
      %s127 = ssub.s32 128, 128
      %128 = vsyncadd [#allocation4], %s127
      %s130 = sshll.u32 [#allocation7], 4
      %s131 = int_to_ptr.vmem [resolvable:$true] %s130
      %133 = dma.vmem_to_hbm [thread:$0]  %s131, 128, %s2, [#allocation4]
    $region25: #{tpu_custom_call.1} parent=1 // pred_fallthru
      _
    // Predicated region
    $region26: #{tpu_custom_call.1} parent=1 // pred_check
      _
    $region27: #{tpu_custom_call.1} parent=1 // pred_check_branch
      %135 = sbr.rel (0) target = $region29
    $region28: #{tpu_custom_call.1} parent=1 // pred_region
      %136 = dma.done [#allocation4], 128
    $region29: #{tpu_custom_call.1} parent=1 // pred_fallthru
      _
    %137 = vsyncpa [#allocation3], 1
    %138 = vsyncpa [#allocation6], 1
    %139 = vsyncpa [#allocation4], 1

</llo_original>
